<compile_context>
chip_gen: v6e
topology: v6e:2x2x1
jax: 0.10.0
libtpu: 0.0.40
codegen_flags: <defaults>
</compile_context>

<pallas_src>
import functools

import jax
import jax.numpy as jnp
from jax.experimental import pallas as pl
from jax.experimental.pallas import tpu as pltpu

STATE_SIZE = 200    # module default
DROPOUT_P = 0.2
LANE = 128
SUBLANE = 8


def _ffn_kernel_train(x_ref, bits_ref, w1_ref, b1_ref, w2_ref, b2_ref, o_ref,
                      *, keep_threshold, inv_keep):
    # x_ref/bits_ref/o_ref: (TM, Dp); w*_ref: (Dp, Dp); b*_ref: (1, Dp)
    x = x_ref[...]

    # lr1 + ReLU  (MXU matmul, f32 accumulate)
    h = jnp.dot(x, w1_ref[...], preferred_element_type=jnp.float32)
    h = jnp.maximum(h + b1_ref[...], 0.0)

    # lr2
    y = jnp.dot(h.astype(w2_ref.dtype), w2_ref[...],
                preferred_element_type=jnp.float32)
    y = y + b2_ref[...]

    # Inverted dropout: integer-domain keep test (no int->float convert).
    keep = bits_ref[...] >= jnp.uint32(keep_threshold)
    y = jnp.where(keep, y * jnp.float32(inv_keep), 0.0)

    o_ref[...] = y.astype(o_ref.dtype)


def _ffn_kernel_eval(x_ref, w1_ref, b1_ref, w2_ref, b2_ref, o_ref):
    x = x_ref[...]
    h = jnp.dot(x, w1_ref[...], preferred_element_type=jnp.float32)
    h = jnp.maximum(h + b1_ref[...], 0.0)
    y = jnp.dot(h.astype(w2_ref.dtype), w2_ref[...],
                preferred_element_type=jnp.float32)
    o_ref[...] = (y + b2_ref[...]).astype(o_ref.dtype)


def _round_up(v, m):
    return (v + m - 1) // m * m


def ffn_pallas(x, w1, b1, w2, b2, *, p=DROPOUT_P, training=True,
               dropout_key=None, tile_m=512):
    """x: [..., D]; w1/w2: [D, D] stored [in, out]; b1/b2: [D]."""
    orig_shape = x.shape
    D = orig_shape[-1]
    x2d = x.reshape(-1, D)
    M = x2d.shape[0]

    # Lane-dense feature dim (multiple of 128) and sublane-aligned row tile.
    Dp = _round_up(D, LANE)
    tm = _round_up(min(tile_m, _round_up(M, SUBLANE)), SUBLANE)
    Mp = _round_up(M, tm)

    f32 = jnp.float32
    # Zero padding is exact: padded x cols / w rows are zero, padded w cols
    # and b entries are zero, so the padded output columns are zero and the
    # real columns are untouched.
    xp = jnp.zeros((Mp, Dp), f32).at[:M, :D].set(x2d.astype(f32))
    w1p = jnp.zeros((Dp, Dp), f32).at[:D, :D].set(w1.astype(f32))
    w2p = jnp.zeros((Dp, Dp), f32).at[:D, :D].set(w2.astype(f32))
    b1p = jnp.zeros((1, Dp), f32).at[0, :D].set(b1.astype(f32))
    b2p = jnp.zeros((1, Dp), f32).at[0, :D].set(b2.astype(f32))
    # TODO(synk): for v6e/v7x a bf16 input/weight path (f32 accumulate) would
    # roughly halve HBM traffic; kept f32 here to match the reference exactly.

    grid = (Mp // tm,)
    row_spec = pl.BlockSpec((tm, Dp), lambda i: (i, 0))
    mat_spec = pl.BlockSpec((Dp, Dp), lambda i: (0, 0))   # resident weights
    vec_spec = pl.BlockSpec((1, Dp), lambda i: (0, 0))

    if training and p > 0.0:
        if dropout_key is None:
            dropout_key = jax.random.PRNGKey(0)
        bits = jax.random.bits(dropout_key, (Mp, Dp), jnp.uint32)
        kernel = functools.partial(
            _ffn_kernel_train,
            keep_threshold=int(round(p * 2.0 ** 32)),
            inv_keep=1.0 / (1.0 - p))
        in_specs = [row_spec, row_spec, mat_spec, vec_spec, mat_spec, vec_spec]
        args = (xp, bits, w1p, b1p, w2p, b2p)
    else:
        kernel = _ffn_kernel_eval
        in_specs = [row_spec, mat_spec, vec_spec, mat_spec, vec_spec]
        args = (xp, w1p, b1p, w2p, b2p)

    out = pl.pallas_call(
        kernel,
        out_shape=jax.ShapeDtypeStruct((Mp, Dp), f32),
        grid=grid,
        in_specs=in_specs,
        out_specs=row_spec,
        compiler_params=pltpu.CompilerParams(
            dimension_semantics=("parallel",)),  # no cross-step state -> shard
    )(*args)

    return out[:M, :D].reshape(orig_shape)


def init_params(key, d):
    # Deterministic init mimicking nn.Linear (uniform +/- 1/sqrt(fan_in)),
    # weights stored [in, out].
    k1, k2, k3, k4 = jax.random.split(key, 4)
    bound = 1.0 / jnp.sqrt(d)
    w1 = jax.random.uniform(k1, (d, d), jnp.float32, -bound, bound)
    b1 = jax.random.uniform(k2, (d,), jnp.float32, -bound, bound)
    w2 = jax.random.uniform(k3, (d, d), jnp.float32, -bound, bound)
    b2 = jax.random.uniform(k4, (d,), jnp.float32, -bound, bound)
    return w1, b1, w2, b2


if __name__ == "__main__":
    key = jax.random.PRNGKey(0)
    k_x, k_p, k_drop = jax.random.split(key, 3)

    batch, seq, d = 2, 8, STATE_SIZE
    x = jax.random.normal(k_x, (batch, seq, d), jnp.float32)
    w1, b1, w2, b2 = init_params(k_p, d)

    # training-mode forward (dropout active)
    out_train = ffn_pallas(x, w1, b1, w2, b2, training=True,
                           dropout_key=k_drop)
    jax.block_until_ready(out_train)
    assert out_train.shape == (batch, seq, d)

    # eval-mode forward, checked against a plain-JAX reference
    x2d = x.reshape(-1, d)
    ref = (jnp.maximum(x2d @ w1 + b1, 0.0) @ w2 + b2).reshape(batch, seq, d)
    out_eval = ffn_pallas(x, w1, b1, w2, b2, training=False)
    jax.block_until_ready(out_eval)
    assert jnp.allclose(out_eval, ref, atol=1e-4, rtol=1e-4)

    # dropout sanity: surviving elements are the eval output scaled by 1/(1-p)
    kept = out_train != 0.0
    scaled = out_eval / (1.0 - DROPOUT_P)
    assert jnp.allclose(jnp.where(kept, out_train, 0.0),
                        jnp.where(kept, scaled, 0.0), atol=1e-4, rtol=1e-4)

    print("KERNEL_OK")
</pallas_src>

<mosaic_0001>
module attributes {stable_mosaic.version = 11 : i64} {
  func.func @_ffn_kernel_train(%arg0: i32, %arg1: memref<16x256xf32, #tpu.memory_space<vmem>>, %arg2: memref<16x256xi32, #tpu.memory_space<vmem>>, %arg3: memref<256x256xf32, #tpu.memory_space<vmem>>, %arg4: memref<1x256xf32, #tpu.memory_space<vmem>>, %arg5: memref<256x256xf32, #tpu.memory_space<vmem>>, %arg6: memref<1x256xf32, #tpu.memory_space<vmem>>, %arg7: memref<16x256xf32, #tpu.memory_space<vmem>>) attributes {dimension_semantics = [#tpu.dimension_semantics<parallel>], iteration_bounds = array<i64: 1>, scalar_prefetch = 0 : i64, scratch_operands = 0 : i64, tpu.core_type = #tpu.core_type<tc>, window_params = [{transform_indices = @transform_0, window_bounds = array<i64: 16, 256>}, {transform_indices = @transform_1, window_bounds = array<i64: 16, 256>}, {pipeline_mode = #tpu.pipeline_mode<synchronous>, transform_indices = @transform_2, window_bounds = array<i64: 256, 256>}, {pipeline_mode = #tpu.pipeline_mode<synchronous>, transform_indices = @transform_3, window_bounds = array<i64: 1, 256>}, {pipeline_mode = #tpu.pipeline_mode<synchronous>, transform_indices = @transform_4, window_bounds = array<i64: 256, 256>}, {pipeline_mode = #tpu.pipeline_mode<synchronous>, transform_indices = @transform_5, window_bounds = array<i64: 1, 256>}, {transform_indices = @transform_6, window_bounds = array<i64: 16, 256>}]} {
    %c0 = arith.constant 0 : index
    %c0_0 = arith.constant 0 : index
    %0 = vector.load %arg1[%c0, %c0_0] : memref<16x256xf32, #tpu.memory_space<vmem>>, vector<16x256xf32>
    %c0_1 = arith.constant 0 : index
    %c0_2 = arith.constant 0 : index
    %1 = vector.load %arg3[%c0_1, %c0_2] : memref<256x256xf32, #tpu.memory_space<vmem>>, vector<256x256xf32>
    %cst = arith.constant dense<0.000000e+00> : vector<16x256xf32>
    %2 = tpu.matmul %0, %1, %cst {dimension_numbers = #tpu.dot_dimension_numbers<[1], [0], [0], [1], [0, 0, 1, 1], [], []>} : vector<16x256xf32>, vector<256x256xf32>, vector<16x256xf32> -> vector<16x256xf32>
    %c0_3 = arith.constant 0 : index
    %c0_4 = arith.constant 0 : index
    %3 = vector.load %arg4[%c0_3, %c0_4] : memref<1x256xf32, #tpu.memory_space<vmem>>, vector<1x256xf32>
    %4 = vector.broadcast %3 : vector<1x256xf32> to vector<16x256xf32>
    %5 = arith.addf %2, %4 : vector<16x256xf32>
    %cst_5 = arith.constant 0.000000e+00 : f32
    %6 = vector.broadcast %cst_5 : f32 to vector<16x256xf32>
    %7 = arith.maximumf %5, %6 : vector<16x256xf32>
    %c0_6 = arith.constant 0 : index
    %c0_7 = arith.constant 0 : index
    %8 = vector.load %arg5[%c0_6, %c0_7] : memref<256x256xf32, #tpu.memory_space<vmem>>, vector<256x256xf32>
    %cst_8 = arith.constant dense<0.000000e+00> : vector<16x256xf32>
    %9 = tpu.matmul %7, %8, %cst_8 {dimension_numbers = #tpu.dot_dimension_numbers<[1], [0], [0], [1], [0, 0, 1, 1], [], []>} : vector<16x256xf32>, vector<256x256xf32>, vector<16x256xf32> -> vector<16x256xf32>
    %c0_9 = arith.constant 0 : index
    %c0_10 = arith.constant 0 : index
    %10 = vector.load %arg6[%c0_9, %c0_10] : memref<1x256xf32, #tpu.memory_space<vmem>>, vector<1x256xf32>
    %11 = vector.broadcast %10 : vector<1x256xf32> to vector<16x256xf32>
    %12 = arith.addf %9, %11 : vector<16x256xf32>
    %c0_11 = arith.constant 0 : index
    %c0_12 = arith.constant 0 : index
    %13 = vector.load %arg2[%c0_11, %c0_12] : memref<16x256xi32, #tpu.memory_space<vmem>>, vector<16x256xi32>
    %c858993459_i32 = arith.constant 858993459 : i32
    %14 = vector.broadcast %c858993459_i32 : i32 to vector<16x256xi32>
    %15 = arith.cmpi uge, %13, %14 : vector<16x256xi32>
    %cst_13 = arith.constant 1.250000e+00 : f32
    %16 = vector.broadcast %cst_13 : f32 to vector<16x256xf32>
    %17 = arith.mulf %12, %16 : vector<16x256xf32>
    %cst_14 = arith.constant 0.000000e+00 : f32
    %18 = vector.broadcast %cst_14 : f32 to vector<16x256xf32>
    %19 = arith.select %15, %17, %18 : vector<16x256xi1>, vector<16x256xf32>
    %c0_15 = arith.constant 0 : index
    %c0_16 = arith.constant 0 : index
    %20 = vector.load %arg7[%c0_15, %c0_16] : memref<16x256xf32, #tpu.memory_space<vmem>>, vector<16x256xf32>
    tpu.vector_store %arg7[%c0_15, %c0_16], %19 {strides = array<i32>} : memref<16x256xf32, #tpu.memory_space<vmem>>, vector<16x256xf32>,
    return
  }
  func.func @transform_0(%arg0: i32) -> (i32, i32) {
    %c0_i32 = arith.constant 0 : i32
    %c0_i32_0 = arith.constant 0 : i32
    return %arg0, %c0_i32 : i32, i32
  }
  func.func @transform_1(%arg0: i32) -> (i32, i32) {
    %c0_i32 = arith.constant 0 : i32
    %c0_i32_0 = arith.constant 0 : i32
    return %arg0, %c0_i32 : i32, i32
  }
  func.func @transform_2(%arg0: i32) -> (i32, i32) {
    %c0_i32 = arith.constant 0 : i32
    %c0_i32_0 = arith.constant 0 : i32
    %c0_i32_1 = arith.constant 0 : i32
    return %c0_i32, %c0_i32_0 : i32, i32
  }
  func.func @transform_3(%arg0: i32) -> (i32, i32) {
    %c0_i32 = arith.constant 0 : i32
    %c0_i32_0 = arith.constant 0 : i32
    %c0_i32_1 = arith.constant 0 : i32
    return %c0_i32, %c0_i32_0 : i32, i32
  }
  func.func @transform_4(%arg0: i32) -> (i32, i32) {
    %c0_i32 = arith.constant 0 : i32
    %c0_i32_0 = arith.constant 0 : i32
    %c0_i32_1 = arith.constant 0 : i32
    return %c0_i32, %c0_i32_0 : i32, i32
  }
  func.func @transform_5(%arg0: i32) -> (i32, i32) {
    %c0_i32 = arith.constant 0 : i32
    %c0_i32_0 = arith.constant 0 : i32
    %c0_i32_1 = arith.constant 0 : i32
    return %c0_i32, %c0_i32_0 : i32, i32
  }
  func.func @transform_6(%arg0: i32) -> (i32, i32) {
    %c0_i32 = arith.constant 0 : i32
    %c0_i32_0 = arith.constant 0 : i32
    return %arg0, %c0_i32 : i32, i32
  }
}

</mosaic_0001>

<llo_original>
// kernel: tpu_custom_call.1
$region0: #{tpu_custom_call.1}
  #allocation0 [shape = 'u32[]', space=smem, size = 0x4, offset = 0x4, fixed_abs, tag = 'smem constant byte address 0x4 - core index']
  #allocation1 [shape = 'u32[144,128]{1,0:T(1,128)}', space=vmem, size = 0x12000, scoped, tag = 'internal scratch']
  %s0 = inlined_call_operand.hbm [shape: f32[16,256], index: 0, kind: input, shape index: {}]
  %s1 = inlined_call_operand.hbm [shape: u32[16,256], index: 1, kind: input, shape index: {}]
  %s2 = inlined_call_operand.hbm [shape: f32[256,256], index: 2, kind: input, shape index: {}]
  %s3 = inlined_call_operand.vmem [shape: f32[1,256], index: 3, kind: input, shape index: {}]
  %s4 = inlined_call_operand.hbm [shape: f32[256,256], index: 4, kind: input, shape index: {}]
  %s5 = inlined_call_operand.vmem [shape: f32[1,256], index: 5, kind: input, shape index: {}]
  %s6 = inlined_call_operand.hbm [shape: f32[16,256], index: 6, kind: output, shape index: {}]
  %s7 = sld [smem:[#allocation0]]
  $region50: #{tpu_custom_call.1} parent=0
    _
  %s9 = ssub.s32 1, %s7
  %s10 = scalar_select 0, %s9, %s7
  $region1: #{tpu_custom_call.1} parent=0
    #allocation2 [shape = 'u8[16384]{0}', space=vmem, size = 0x4000, scoped, tag = 'input window, operand 0, single buffered']
    #allocation3 [shape = 's32[1]{0}', space=sflag, size = 0x4, scoped, tag = 'scoped memory for tpu_custom_call.1']
    #allocation4 [shape = 's32[1]{0}', space=sflag, size = 0x4, scoped, tag = 'scoped memory for tpu_custom_call.1']
    #allocation5 [shape = 'u8[16384]{0}', space=vmem, size = 0x4000, scoped, tag = 'input window, operand 1, single buffered']
    #allocation6 [shape = 's32[1]{0}', space=sflag, size = 0x4, scoped, tag = 'scoped memory for tpu_custom_call.1']
    #allocation7 [shape = 'u8[262144]{0}', space=vmem, size = 0x40000, scoped, tag = 'input window, operand 2, single buffered']
    #allocation8 [shape = 'u8[262144]{0}', space=vmem, size = 0x40000, scoped, tag = 'input window, operand 4, single buffered']
    #allocation9 [shape = 's32[1]{0}', space=sflag, size = 0x4, scoped, tag = 'scoped memory for tpu_custom_call.1']
    #allocation10 [shape = 'u8[16384]{0}', space=vmem, size = 0x4000, scoped, tag = 'output window, operand 0, single buffered']
    %11 = vsyncpa [#allocation3], 0
    %12 = vsyncpa [#allocation6], 0
    %13 = vsyncpa [#allocation9], 0
    %14 = vsyncpa [#allocation4], 0
    // Predicated region
    $region2: #{tpu_custom_call.1} parent=1 // pred_check
      _
    $region3: #{tpu_custom_call.1} parent=1 // pred_check_branch
      %16 = sbr.rel (0) target = $region5
    $region4: #{tpu_custom_call.1} parent=1 // pred_region
      %s18 = ssub.s32 512, 512
      %19 = vsyncadd [#allocation3], %s18
      %s20 = sshll.u32 [#allocation2], 4
      %s21 = int_to_ptr.vmem [resolvable:$true] %s20
      %26 = dma.hbm_to_vmem [thread:$0]  %s0, 512, %s21, [#allocation3], 256, 256, 16
    $region5: #{tpu_custom_call.1} parent=1 // pred_fallthru
      _
    // Predicated region
    $region6: #{tpu_custom_call.1} parent=1 // pred_check
      _
    $region7: #{tpu_custom_call.1} parent=1 // pred_check_branch
      %28 = sbr.rel (0) target = $region9
    $region8: #{tpu_custom_call.1} parent=1 // pred_region
      %s30 = ssub.s32 512, 512
      %31 = vsyncadd [#allocation6], %s30
      %s32 = sshll.u32 [#allocation5], 4
      %s33 = int_to_ptr.vmem [resolvable:$true] %s32
      %38 = dma.hbm_to_vmem [thread:$0]  %s1, 512, %s33, [#allocation6], 256, 256, 16
    $region9: #{tpu_custom_call.1} parent=1 // pred_fallthru
      _
    // Predicated region
    $region10: #{tpu_custom_call.1} parent=1 // pred_check
      _
    $region11: #{tpu_custom_call.1} parent=1 // pred_check_branch
      %40 = sbr.rel (0) target = $region13
    $region12: #{tpu_custom_call.1} parent=1 // pred_region
      %s42 = ssub.s32 8192, 8192
      %43 = vsyncadd [#allocation6], %s42
      %s44 = sshll.u32 [#allocation7], 4
      %s45 = int_to_ptr.vmem [resolvable:$true] %s44
      %50 = dma.hbm_to_vmem [thread:$0]  %s2, 8192, %s45, [#allocation6], 256, 256, 16
    $region13: #{tpu_custom_call.1} parent=1 // pred_fallthru
      _
    // Predicated region
    $region14: #{tpu_custom_call.1} parent=1 // pred_check
      _
    $region15: #{tpu_custom_call.1} parent=1 // pred_check_branch
      %52 = sbr.rel (0) target = $region17
    $region16: #{tpu_custom_call.1} parent=1 // pred_region
      _
    $region17: #{tpu_custom_call.1} parent=1 // pred_fallthru
      _
    // Predicated region
    $region18: #{tpu_custom_call.1} parent=1 // pred_check
      _
    $region19: #{tpu_custom_call.1} parent=1 // pred_check_branch
      %54 = sbr.rel (0) target = $region21
    $region20: #{tpu_custom_call.1} parent=1 // pred_region
      %s56 = ssub.s32 8192, 8192
      %57 = vsyncadd [#allocation9], %s56
      %s58 = sshll.u32 [#allocation8], 4
      %s59 = int_to_ptr.vmem [resolvable:$true] %s58
      %64 = dma.hbm_to_vmem [thread:$0]  %s4, 8192, %s59, [#allocation9], 256, 256, 16
    $region21: #{tpu_custom_call.1} parent=1 // pred_fallthru
      _
    // Predicated region
    $region22: #{tpu_custom_call.1} parent=1 // pred_check
      _
    $region23: #{tpu_custom_call.1} parent=1 // pred_check_branch
      %66 = sbr.rel (0) target = $region25
    $region24: #{tpu_custom_call.1} parent=1 // pred_region
      _
    $region25: #{tpu_custom_call.1} parent=1 // pred_fallthru
      _
    // Predicated region
    $region26: #{tpu_custom_call.1} parent=1 // pred_check
      _
    $region27: #{tpu_custom_call.1} parent=1 // pred_check_branch
      %68 = sbr.rel (0) target = $region29
    $region28: #{tpu_custom_call.1} parent=1 // pred_region
      %69 = dma.done [#allocation3], 512
    $region29: #{tpu_custom_call.1} parent=1 // pred_fallthru
      _
    // Predicated region
    $region30: #{tpu_custom_call.1} parent=1 // pred_check
      _
    $region31: #{tpu_custom_call.1} parent=1 // pred_check_branch
      %71 = sbr.rel (0) target = $region33
    $region32: #{tpu_custom_call.1} parent=1 // pred_region
      %72 = dma.done [#allocation6], 512
    $region33: #{tpu_custom_call.1} parent=1 // pred_fallthru
      _
    // Predicated region
    $region34: #{tpu_custom_call.1} parent=1 // pred_check
      _
    $region35: #{tpu_custom_call.1} parent=1 // pred_check_branch
      %74 = sbr.rel (0) target = $region37
    $region36: #{tpu_custom_call.1} parent=1 // pred_region
      %75 = dma.done [#allocation6], 8192
    $region37: #{tpu_custom_call.1} parent=1 // pred_fallthru
      _
    // Predicated region
    $region38: #{tpu_custom_call.1} parent=1 // pred_check
      _
    $region39: #{tpu_custom_call.1} parent=1 // pred_check_branch
      %77 = sbr.rel (0) target = $region41
    $region40: #{tpu_custom_call.1} parent=1 // pred_region
      %78 = dma.done [#allocation9], 8192
    $region41: #{tpu_custom_call.1} parent=1 // pred_fallthru
      _
    %v79 = vld [vmem:[#allocation2] sm:$0xff]
    %v80 = vld [vmem:[#allocation2 + $0x8] sm:$0xff]
    %v81 = vld [vmem:[#allocation2 + $0x10] sm:$0xff]
    %v82 = vld [vmem:[#allocation2 + $0x18] sm:$0xff]
    %v83 = vld [vmem:[#allocation7] sm:$0xff]
    %v84 = vld [vmem:[#allocation7 + $0x8] sm:$0xff]
    %v85 = vld [vmem:[#allocation7 + $0x10] sm:$0xff]
    %v86 = vld [vmem:[#allocation7 + $0x18] sm:$0xff]
    %v87 = vld [vmem:[#allocation7 + $0x20] sm:$0xff]
    %v88 = vld [vmem:[#allocation7 + $0x28] sm:$0xff]
    %v89 = vld [vmem:[#allocation7 + $0x30] sm:$0xff]
    %v90 = vld [vmem:[#allocation7 + $0x38] sm:$0xff]
    %v91 = vld [vmem:[#allocation7 + $0x40] sm:$0xff]
    %v92 = vld [vmem:[#allocation7 + $0x48] sm:$0xff]
    %v93 = vld [vmem:[#allocation7 + $0x50] sm:$0xff]
    %v94 = vld [vmem:[#allocation7 + $0x58] sm:$0xff]
    %v95 = vld [vmem:[#allocation7 + $0x60] sm:$0xff]
    %v96 = vld [vmem:[#allocation7 + $0x68] sm:$0xff]
    %v97 = vld [vmem:[#allocation7 + $0x70] sm:$0xff]
    %v98 = vld [vmem:[#allocation7 + $0x78] sm:$0xff]
    %v99 = vld [vmem:[#allocation7 + $0x80] sm:$0xff]
    %v100 = vld [vmem:[#allocation7 + $0x88] sm:$0xff]
    %v101 = vld [vmem:[#allocation7 + $0x90] sm:$0xff]
    %v102 = vld [vmem:[#allocation7 + $0x98] sm:$0xff]
    %v103 = vld [vmem:[#allocation7 + $0xa0] sm:$0xff]
    %v104 = vld [vmem:[#allocation7 + $0xa8] sm:$0xff]
    %v105 = vld [vmem:[#allocation7 + $0xb0] sm:$0xff]
    %v106 = vld [vmem:[#allocation7 + $0xb8] sm:$0xff]
    %v107 = vld [vmem:[#allocation7 + $0xc0] sm:$0xff]
    %v108 = vld [vmem:[#allocation7 + $0xc8] sm:$0xff]
    %v109 = vld [vmem:[#allocation7 + $0xd0] sm:$0xff]
    %v110 = vld [vmem:[#allocation7 + $0xd8] sm:$0xff]
    %v111 = vld [vmem:[#allocation7 + $0xe0] sm:$0xff]
    %v112 = vld [vmem:[#allocation7 + $0xe8] sm:$0xff]
    %v113 = vld [vmem:[#allocation7 + $0xf0] sm:$0xff]
    %v114 = vld [vmem:[#allocation7 + $0xf8] sm:$0xff]
    %v115 = vld [vmem:[#allocation7 + $0x100] sm:$0xff]
    %v116 = vld [vmem:[#allocation7 + $0x108] sm:$0xff]
    %v117 = vld [vmem:[#allocation7 + $0x110] sm:$0xff]
    %v118 = vld [vmem:[#allocation7 + $0x118] sm:$0xff]
    %v119 = vld [vmem:[#allocation7 + $0x120] sm:$0xff]
    %v120 = vld [vmem:[#allocation7 + $0x128] sm:$0xff]
    %v121 = vld [vmem:[#allocation7 + $0x130] sm:$0xff]
    %v122 = vld [vmem:[#allocation7 + $0x138] sm:$0xff]
    %v123 = vld [vmem:[#allocation7 + $0x140] sm:$0xff]
    %v124 = vld [vmem:[#allocation7 + $0x148] sm:$0xff]
    %v125 = vld [vmem:[#allocation7 + $0x150] sm:$0xff]
    %v126 = vld [vmem:[#allocation7 + $0x158] sm:$0xff]
    %v127 = vld [vmem:[#allocation7 + $0x160] sm:$0xff]
    %v128 = vld [vmem:[#allocation7 + $0x168] sm:$0xff]
    %v129 = vld [vmem:[#allocation7 + $0x170] sm:$0xff]
    %v130 = vld [vmem:[#allocation7 + $0x178] sm:$0xff]
    %v131 = vld [vmem:[#allocation7 + $0x180] sm:$0xff]
    %v132 = vld [vmem:[#allocation7 + $0x188] sm:$0xff]
    %v133 = vld [vmem:[#allocation7 + $0x190] sm:$0xff]
    %v134 = vld [vmem:[#allocation7 + $0x198] sm:$0xff]
    %v135 = vld [vmem:[#allocation7 + $0x1a0] sm:$0xff]
    %v136 = vld [vmem:[#allocation7 + $0x1a8] sm:$0xff]
    %v137 = vld [vmem:[#allocation7 + $0x1b0] sm:$0xff]
    %v138 = vld [vmem:[#allocation7 + $0x1b8] sm:$0xff]
    %v139 = vld [vmem:[#allocation7 + $0x1c0] sm:$0xff]
    %v140 = vld [vmem:[#allocation7 + $0x1c8] sm:$0xff]
    %v141 = vld [vmem:[#allocation7 + $0x1d0] sm:$0xff]
    %v142 = vld [vmem:[#allocation7 + $0x1d8] sm:$0xff]
    %v143 = vld [vmem:[#allocation7 + $0x1e0] sm:$0xff]
    %v144 = vld [vmem:[#allocation7 + $0x1e8] sm:$0xff]
    %v145 = vld [vmem:[#allocation7 + $0x1f0] sm:$0xff]
    %v146 = vld [vmem:[#allocation7 + $0x1f8] sm:$0xff]
    %v147 = vld [vmem:[%s3] sm:$0x3]
    %v149 = vlaneseq
    %v150 = vshrl.u32 %v149, 7
    %v151 = vsub.s32 0, %v150
    %v152 = vrot.slane %v147, %v151
    %v153 = vlaneseq
    %v154 = vshrl.u32 %v153, 7
    %v155 = vsub.s32 1, %v154
    %v156 = vrot.slane %v147, %v155
    %159 = vmatprep.subr.mxu0 %v114
    %160 = vmatpush1.msra.mxu0 %v113
    %161 = vmatprep.subr.mxu0 %v112
    %162 = vmatpush1.msra.mxu0 %v111
    %163 = vmatprep.subr.mxu0 %v110
    %164 = vmatpush1.msra.mxu0 %v109
    %165 = vmatprep.subr.mxu0 %v108
    %166 = vmatpush1.msra.mxu0 %v107
    %167 = vmatprep.subr.mxu0 %v106
    %168 = vmatpush1.msra.mxu0 %v105
    %169 = vmatprep.subr.mxu0 %v104
    %170 = vmatpush1.msra.mxu0 %v103
    %171 = vmatprep.subr.mxu0 %v102
    %172 = vmatpush1.msra.mxu0 %v101
    %173 = vmatprep.subr.mxu0 %v100
    %174 = vmatpush1.msra.mxu0 %v99
    %175 = vmatprep.subr.mxu0 %v98
    %176 = vmatpush1.msra.mxu0 %v97
    %177 = vmatprep.subr.mxu0 %v96
    %178 = vmatpush1.msra.mxu0 %v95
    %179 = vmatprep.subr.mxu0 %v94
    %180 = vmatpush1.msra.mxu0 %v93
    %181 = vmatprep.subr.mxu0 %v92
    %182 = vmatpush1.msra.mxu0 %v91
    %183 = vmatprep.subr.mxu0 %v90
    %184 = vmatpush1.msra.mxu0 %v89
    %185 = vmatprep.subr.mxu0 %v88
    %186 = vmatpush1.msra.mxu0 %v87
    %187 = vmatprep.subr.mxu0 %v86
    %188 = vmatpush1.msra.mxu0 %v85
    %189 = vmatprep.subr.mxu0 %v84
    %190 = vmatpush1.msra.mxu0 %v83
    %191 = vmatprep.subr.mxu0 %v146
    %192 = vmatpush2.msra.mxu0 %v145
    %193 = vmatprep.subr.mxu0 %v144
    %194 = vmatpush2.msra.mxu0 %v143
    %195 = vmatprep.subr.mxu0 %v142
    %196 = vmatpush2.msra.mxu0 %v141
    %197 = vmatprep.subr.mxu0 %v140
    %198 = vmatpush2.msra.mxu0 %v139
    %199 = vmatprep.subr.mxu0 %v138
    %200 = vmatpush2.msra.mxu0 %v137
    %201 = vmatprep.subr.mxu0 %v136
    %202 = vmatpush2.msra.mxu0 %v135
    %203 = vmatprep.subr.mxu0 %v134
    %204 = vmatpush2.msra.mxu0 %v133
    %205 = vmatprep.subr.mxu0 %v132
    %206 = vmatpush2.msra.mxu0 %v131
    %207 = vmatprep.subr.mxu0 %v130
    %208 = vmatpush2.msra.mxu0 %v129
    %209 = vmatprep.subr.mxu0 %v128
    %210 = vmatpush2.msra.mxu0 %v127
    %211 = vmatprep.subr.mxu0 %v126
    %212 = vmatpush2.msra.mxu0 %v125
    %213 = vmatprep.subr.mxu0 %v124
    %214 = vmatpush2.msra.mxu0 %v123
    %215 = vmatprep.subr.mxu0 %v122
    %216 = vmatpush2.msra.mxu0 %v121
    %217 = vmatprep.subr.mxu0 %v120
    %218 = vmatpush2.msra.mxu0 %v119
    %219 = vmatprep.subr.mxu0 %v118
    %220 = vmatpush2.msra.mxu0 %v117
    %221 = vmatprep.subr.mxu0 %v116
    %222 = vmatpush2.msra.mxu0 %v115
    %223 = vmatprep.mubr.f32.mxu0 %v80
    %224 = vmatmul.mubr.f32.gmra.mxu0 %v79
    %v225 = vpop.f32.mrf.mxu0
    %v226 = vadd.f32 %v152, %v225
    %v227 = vpop.f32.mrf.mxu0
    %v228 = vadd.f32 %v156, %v227
    %229 = vmatprep.mubr.f32.mxu0 %v82
    %230 = vmatmul.mubr.f32.gmra.mxu0 %v81
    %v231 = vpop.f32.mrf.mxu0
    %v232 = vadd.f32 %v152, %v231
    %v233 = vpop.f32.mrf.mxu0
    %v234 = vadd.f32 %v156, %v233
    %235 = vdwg.mxu0
    %v236 = vmax.f32 %v226, 0.0
    %v237 = vmax.f32 %v228, 0.0
    %v238 = vmax.f32 %v232, 0.0
    %v239 = vmax.f32 %v234, 0.0
    %v240 = vld [vmem:[#allocation8] sm:$0xff]
    %v241 = vld [vmem:[#allocation8 + $0x8] sm:$0xff]
    %v242 = vld [vmem:[#allocation8 + $0x10] sm:$0xff]
    %v243 = vld [vmem:[#allocation8 + $0x18] sm:$0xff]
    %v244 = vld [vmem:[#allocation8 + $0x20] sm:$0xff]
    %v245 = vld [vmem:[#allocation8 + $0x28] sm:$0xff]
    %v246 = vld [vmem:[#allocation8 + $0x30] sm:$0xff]
    %v247 = vld [vmem:[#allocation8 + $0x38] sm:$0xff]
    %v248 = vld [vmem:[#allocation8 + $0x40] sm:$0xff]
    %v249 = vld [vmem:[#allocation8 + $0x48] sm:$0xff]
    %v250 = vld [vmem:[#allocation8 + $0x50] sm:$0xff]
    %v251 = vld [vmem:[#allocation8 + $0x58] sm:$0xff]
    %v252 = vld [vmem:[#allocation8 + $0x60] sm:$0xff]
    %v253 = vld [vmem:[#allocation8 + $0x68] sm:$0xff]
    %v254 = vld [vmem:[#allocation8 + $0x70] sm:$0xff]
    %v255 = vld [vmem:[#allocation8 + $0x78] sm:$0xff]
    %v256 = vld [vmem:[#allocation8 + $0x80] sm:$0xff]
    %v257 = vld [vmem:[#allocation8 + $0x88] sm:$0xff]
    %v258 = vld [vmem:[#allocation8 + $0x90] sm:$0xff]
    %v259 = vld [vmem:[#allocation8 + $0x98] sm:$0xff]
    %v260 = vld [vmem:[#allocation8 + $0xa0] sm:$0xff]
    %v261 = vld [vmem:[#allocation8 + $0xa8] sm:$0xff]
    %v262 = vld [vmem:[#allocation8 + $0xb0] sm:$0xff]
    %v263 = vld [vmem:[#allocation8 + $0xb8] sm:$0xff]
    %v264 = vld [vmem:[#allocation8 + $0xc0] sm:$0xff]
    %v265 = vld [vmem:[#allocation8 + $0xc8] sm:$0xff]
    %v266 = vld [vmem:[#allocation8 + $0xd0] sm:$0xff]
    %v267 = vld [vmem:[#allocation8 + $0xd8] sm:$0xff]
    %v268 = vld [vmem:[#allocation8 + $0xe0] sm:$0xff]
    %v269 = vld [vmem:[#allocation8 + $0xe8] sm:$0xff]
    %v270 = vld [vmem:[#allocation8 + $0xf0] sm:$0xff]
    %v271 = vld [vmem:[#allocation8 + $0xf8] sm:$0xff]
    %v272 = vld [vmem:[#allocation8 + $0x100] sm:$0xff]
    %v273 = vld [vmem:[#allocation8 + $0x108] sm:$0xff]
    %v274 = vld [vmem:[#allocation8 + $0x110] sm:$0xff]
    %v275 = vld [vmem:[#allocation8 + $0x118] sm:$0xff]
    %v276 = vld [vmem:[#allocation8 + $0x120] sm:$0xff]
    %v277 = vld [vmem:[#allocation8 + $0x128] sm:$0xff]
    %v278 = vld [vmem:[#allocation8 + $0x130] sm:$0xff]
    %v279 = vld [vmem:[#allocation8 + $0x138] sm:$0xff]
    %v280 = vld [vmem:[#allocation8 + $0x140] sm:$0xff]
    %v281 = vld [vmem:[#allocation8 + $0x148] sm:$0xff]
    %v282 = vld [vmem:[#allocation8 + $0x150] sm:$0xff]
    %v283 = vld [vmem:[#allocation8 + $0x158] sm:$0xff]
    %v284 = vld [vmem:[#allocation8 + $0x160] sm:$0xff]
    %v285 = vld [vmem:[#allocation8 + $0x168] sm:$0xff]
    %v286 = vld [vmem:[#allocation8 + $0x170] sm:$0xff]
    %v287 = vld [vmem:[#allocation8 + $0x178] sm:$0xff]
    %v288 = vld [vmem:[#allocation8 + $0x180] sm:$0xff]
    %v289 = vld [vmem:[#allocation8 + $0x188] sm:$0xff]
    %v290 = vld [vmem:[#allocation8 + $0x190] sm:$0xff]
    %v291 = vld [vmem:[#allocation8 + $0x198] sm:$0xff]
    %v292 = vld [vmem:[#allocation8 + $0x1a0] sm:$0xff]
    %v293 = vld [vmem:[#allocation8 + $0x1a8] sm:$0xff]
    %v294 = vld [vmem:[#allocation8 + $0x1b0] sm:$0xff]
    %v295 = vld [vmem:[#allocation8 + $0x1b8] sm:$0xff]
    %v296 = vld [vmem:[#allocation8 + $0x1c0] sm:$0xff]
    %v297 = vld [vmem:[#allocation8 + $0x1c8] sm:$0xff]
    %v298 = vld [vmem:[#allocation8 + $0x1d0] sm:$0xff]
    %v299 = vld [vmem:[#allocation8 + $0x1d8] sm:$0xff]
    %v300 = vld [vmem:[#allocation8 + $0x1e0] sm:$0xff]
    %v301 = vld [vmem:[#allocation8 + $0x1e8] sm:$0xff]
    %v302 = vld [vmem:[#allocation8 + $0x1f0] sm:$0xff]
    %v303 = vld [vmem:[#allocation8 + $0x1f8] sm:$0xff]
    %v304 = vld [vmem:[%s5] sm:$0x3]
    %v306 = vlaneseq
    %v307 = vshrl.u32 %v306, 7
    %v308 = vsub.s32 0, %v307
    %v309 = vrot.slane %v304, %v308
    %v310 = vlaneseq
    %v311 = vshrl.u32 %v310, 7
    %v312 = vsub.s32 1, %v311
    %v313 = vrot.slane %v304, %v312
    %316 = vmatprep.subr.mxu0 %v271
    %317 = vmatpush1.msra.mxu0 %v270
    %318 = vmatprep.subr.mxu0 %v269
    %319 = vmatpush1.msra.mxu0 %v268
    %320 = vmatprep.subr.mxu0 %v267
    %321 = vmatpush1.msra.mxu0 %v266
    %322 = vmatprep.subr.mxu0 %v265
    %323 = vmatpush1.msra.mxu0 %v264
    %324 = vmatprep.subr.mxu0 %v263
    %325 = vmatpush1.msra.mxu0 %v262
    %326 = vmatprep.subr.mxu0 %v261
    %327 = vmatpush1.msra.mxu0 %v260
    %328 = vmatprep.subr.mxu0 %v259
    %329 = vmatpush1.msra.mxu0 %v258
    %330 = vmatprep.subr.mxu0 %v257
    %331 = vmatpush1.msra.mxu0 %v256
    %332 = vmatprep.subr.mxu0 %v255
    %333 = vmatpush1.msra.mxu0 %v254
    %334 = vmatprep.subr.mxu0 %v253
    %335 = vmatpush1.msra.mxu0 %v252
    %336 = vmatprep.subr.mxu0 %v251
    %337 = vmatpush1.msra.mxu0 %v250
    %338 = vmatprep.subr.mxu0 %v249
    %339 = vmatpush1.msra.mxu0 %v248
    %340 = vmatprep.subr.mxu0 %v247
    %341 = vmatpush1.msra.mxu0 %v246
    %342 = vmatprep.subr.mxu0 %v245
    %343 = vmatpush1.msra.mxu0 %v244
    %344 = vmatprep.subr.mxu0 %v243
    %345 = vmatpush1.msra.mxu0 %v242
    %346 = vmatprep.subr.mxu0 %v241
    %347 = vmatpush1.msra.mxu0 %v240
    %348 = vmatprep.subr.mxu0 %v303
    %349 = vmatpush2.msra.mxu0 %v302
    %350 = vmatprep.subr.mxu0 %v301
    %351 = vmatpush2.msra.mxu0 %v300
    %352 = vmatprep.subr.mxu0 %v299
    %353 = vmatpush2.msra.mxu0 %v298
    %354 = vmatprep.subr.mxu0 %v297
    %355 = vmatpush2.msra.mxu0 %v296
    %356 = vmatprep.subr.mxu0 %v295
    %357 = vmatpush2.msra.mxu0 %v294
    %358 = vmatprep.subr.mxu0 %v293
    %359 = vmatpush2.msra.mxu0 %v292
    %360 = vmatprep.subr.mxu0 %v291
    %361 = vmatpush2.msra.mxu0 %v290
    %362 = vmatprep.subr.mxu0 %v289
    %363 = vmatpush2.msra.mxu0 %v288
    %364 = vmatprep.subr.mxu0 %v287
    %365 = vmatpush2.msra.mxu0 %v286
    %366 = vmatprep.subr.mxu0 %v285
    %367 = vmatpush2.msra.mxu0 %v284
    %368 = vmatprep.subr.mxu0 %v283
    %369 = vmatpush2.msra.mxu0 %v282
    %370 = vmatprep.subr.mxu0 %v281
    %371 = vmatpush2.msra.mxu0 %v280
    %372 = vmatprep.subr.mxu0 %v279
    %373 = vmatpush2.msra.mxu0 %v278
    %374 = vmatprep.subr.mxu0 %v277
    %375 = vmatpush2.msra.mxu0 %v276
    %376 = vmatprep.subr.mxu0 %v275
    %377 = vmatpush2.msra.mxu0 %v274
    %378 = vmatprep.subr.mxu0 %v273
    %379 = vmatpush2.msra.mxu0 %v272
    %380 = vmatprep.mubr.f32.mxu0 %v237
    %381 = vmatmul.mubr.f32.gmra.mxu0 %v236
    %v382 = vpop.f32.mrf.mxu0
    %v383 = vadd.f32 %v309, %v382
    %v384 = vpop.f32.mrf.mxu0
    %v385 = vadd.f32 %v313, %v384
    %386 = vmatprep.mubr.f32.mxu0 %v239
    %387 = vmatmul.mubr.f32.gmra.mxu0 %v238
    %v388 = vpop.f32.mrf.mxu0
    %v389 = vadd.f32 %v309, %v388
    %v390 = vpop.f32.mrf.mxu0
    %v391 = vadd.f32 %v313, %v390
    %392 = vdwg.mxu0
    %v393 = vld [vmem:[#allocation5] sm:$0xff]
    %v394 = vld [vmem:[#allocation5 + $0x8] sm:$0xff]
    %v395 = vld [vmem:[#allocation5 + $0x10] sm:$0xff]
    %v396 = vld [vmem:[#allocation5 + $0x18] sm:$0xff]
    %vm397 = vcmp.ge.u32.totalorder %v393, 858993459
    %vm398 = vcmp.ge.u32.totalorder %v394, 858993459
    %vm399 = vcmp.ge.u32.totalorder %v395, 858993459
    %vm400 = vcmp.ge.u32.totalorder %v396, 858993459
    %v401 = vmul.f32 %v383, 1.25
    %v402 = vmul.f32 %v385, 1.25
    %v403 = vmul.f32 %v389, 1.25
    %v404 = vmul.f32 %v391, 1.25
    %v405 = vsel %vm397, %v401, 0.0
    %v406 = vsel %vm398, %v402, 0.0
    %v407 = vsel %vm399, %v403, 0.0
    %v408 = vsel %vm400, %v404, 0.0
    %409 = vst [vmem:[#allocation10] sm:$0xff] %v405
    %410 = vst [vmem:[#allocation10 + $0x8] sm:$0xff] %v406
    %411 = vst [vmem:[#allocation10 + $0x10] sm:$0xff] %v407
    %412 = vst [vmem:[#allocation10 + $0x18] sm:$0xff] %v408
    // Predicated region
    $region42: #{tpu_custom_call.1} parent=1 // pred_check
      _
    $region43: #{tpu_custom_call.1} parent=1 // pred_check_branch
      %414 = sbr.rel (0) target = $region45
    $region44: #{tpu_custom_call.1} parent=1 // pred_region
      %s416 = ssub.s32 512, 512
      %417 = vsyncadd [#allocation4], %s416
      %s418 = sshll.u32 [#allocation10], 4
      %s419 = int_to_ptr.vmem [resolvable:$true] %s418
      %424 = dma.vmem_to_hbm [thread:$0]  %s419, 512, %s6, [#allocation4], 256, 256, 16
    $region45: #{tpu_custom_call.1} parent=1 // pred_fallthru
      _
    // Predicated region
    $region46: #{tpu_custom_call.1} parent=1 // pred_check
      _
    $region47: #{tpu_custom_call.1} parent=1 // pred_check_branch
      %426 = sbr.rel (0) target = $region49
    $region48: #{tpu_custom_call.1} parent=1 // pred_region
      %427 = dma.done [#allocation4], 512
    $region49: #{tpu_custom_call.1} parent=1 // pred_fallthru
      _
    %428 = vsyncpa [#allocation3], 1
    %429 = vsyncpa [#allocation6], 1
    %430 = vsyncpa [#allocation9], 1
    %431 = vsyncpa [#allocation4], 1

</llo_original>
